<compile_context>
chip_gen: v7x
topology: tpu7x:2x2x1
jax: 0.10.0
libtpu: 0.0.40
codegen_flags: <defaults>
</compile_context>

<pallas_src>
import jax
import jax.numpy as jnp
from jax.experimental import pallas as pl
from jax.experimental.pallas import tpu as pltpu


def embed_sequence_kernel(x_ref, w_ref, pe0_ref, pe_rest_ref, o_ref):
    # x_ref      : (BT, N, d_patch)    f32   -- BT batch elements per grid step
    # w_ref      : (d_model, d_patch)  bf16  -- torch layout, contracted on last dim
    # pe0_ref    : (1, d_model)        f32   -- pe[0] + cls_embedding (CLS row, x-independent)
    # pe_rest_ref: (N, d_model)        f32   -- pe[1:N+1] + bias
    # o_ref      : (BT, N+1, d_model)  f32
    bt, n, d_patch = x_ref.shape
    d_model = w_ref.shape[0]

    # Fold batch and patch dims so the MXU gets M = BT*N rows in one pass.
    # Cast to bf16 on the VPU (hides under the matmul; halves x's HBM traffic vs a
    # wrapper-side cast + reload).
    x = x_ref[...].reshape(bt * n, d_patch).astype(jnp.bfloat16)
    emb = jax.lax.dot_general(                                           # x @ W^T on the MXU
        x, w_ref[...],
        dimension_numbers=(((1,), (1,)), ((), ())),
        preferred_element_type=jnp.float32,                              # f32 accumulation
    )                                                                    # (BT*N, d_model) f32

    # Bias is already folded into pe_rest; one broadcast add per element.
    emb = emb.reshape(bt, n, d_model) + pe_rest_ref[...][None, :, :]

    # CLS row = cls + pe[0]; identical for every batch element.
    cls_rows = jnp.broadcast_to(pe0_ref[...], (bt, 1, d_model))

    o_ref[:, 0:1, :] = cls_rows.astype(o_ref.dtype)
    o_ref[:, 1:, :] = emb.astype(o_ref.dtype)


def _pick_batch_tile(batch, n, d_patch, d_model, *, max_bt=32, vmem_budget=24 << 20):
    """Largest divisor of `batch` that (a) keeps the double-buffered x/out blocks plus the
    resident weight/PE tables under `vmem_budget`, (b) is <= max_bt, and (c) leaves >= 2 grid
    steps when batch allows (v7x has 2 TensorCores sharding the parallel grid axis)."""
    per_b = 2 * (n * d_patch * 4) + 2 * ((n + 1) * d_model * 4)     # x f32 + out f32, double-buffered
    fixed = d_model * d_patch * 2 + (n + 1) * d_model * 4           # weight bf16 + PE tables f32
    avail = max(vmem_budget - fixed, per_b)
    cap = max(1, min(max_bt, avail // per_b))
    if batch >= 4:
        cap = min(cap, batch // 2)
    bt = 1
    for cand in range(1, min(batch, cap) + 1):
        if batch % cand == 0:
            bt = cand
    return bt


def embed_sequence(x, weight, bias, cls_embedding, pe, *, max_block_batch=32):
    """x: (B, N, d_patch) f32; weight: (d_model, d_patch) [torch nn.Linear layout];
    bias: (d_model,); cls_embedding: (d_model,); pe: (max_len+1, d_model).
    Returns (B, N+1, d_model) f32, matching EmbedSequence.forward."""
    B, N, d_patch = x.shape
    d_model = weight.shape[0]
    assert pe.shape[0] >= N + 1, "max_len must be >= n_patch"

    # Fold bias / CLS into the PE tables once per call (O(N*d_model)), not once per batch
    # element inside the kernel; also splits PE at the CLS boundary so the kernel never does
    # a sublane-offset read of pe[1:, :].
    pe_rest = (pe[1:N + 1] + bias[None, :]).astype(jnp.float32)          # (N, d_model)
    pe0 = (pe[0:1] + cls_embedding[None, :]).astype(jnp.float32)         # (1, d_model)

    # Weight cast once (constant block, DMA'd once; in a real model cast at param-init time).
    w_bf = weight.astype(jnp.bfloat16)                                   # no transpose

    bt = _pick_batch_tile(B, N, d_patch, d_model, max_bt=max_block_batch)
    grid = (B // bt,)

    return pl.pallas_call(
        embed_sequence_kernel,
        out_shape=jax.ShapeDtypeStruct((B, N + 1, d_model), x.dtype),
        grid_spec=pltpu.PrefetchScalarGridSpec(
            num_scalar_prefetch=0,
            grid=grid,
            in_specs=[
                pl.BlockSpec((bt, N, d_patch), lambda b: (b, 0, 0)),     # x (BT batch elems, f32)
                pl.BlockSpec((d_model, d_patch), lambda b: (0, 0)),      # W (torch layout, bf16)
                pl.BlockSpec((1, d_model), lambda b: (0, 0)),            # pe[0] + cls
                pl.BlockSpec((N, d_model), lambda b: (0, 0)),            # pe[1:N+1] + bias
            ],
            out_specs=pl.BlockSpec((bt, N + 1, d_model), lambda b: (b, 0, 0)),
        ),
        compiler_params=pltpu.CompilerParams(
            dimension_semantics=("parallel",),                           # batch axis is parallel
        ),
    )(x, w_bf, pe0, pe_rest)


if __name__ == "__main__":
    # Small shapes consistent with the module's forward. d_patch/d_model kept at 128 so the
    # matmul K dim and the output last dim are lane-dense on all TPU generations.
    B, N_PATCH, D_PATCH, D_MODEL, MAX_LEN = 2, 8, 128, 128, 16

    key = jax.random.PRNGKey(0)
    kx, kw, kb, kc, kp = jax.random.split(key, 5)

    x = jax.random.normal(kx, (B, N_PATCH, D_PATCH), dtype=jnp.float32)
    # nn.Linear(d_patch, d_model): weight (d_model, d_patch), bias (d_model,)
    weight = jax.random.normal(kw, (D_MODEL, D_PATCH), dtype=jnp.float32) * 0.02
    bias = jax.random.normal(kb, (D_MODEL,), dtype=jnp.float32) * 0.02
    # Module inits pe / cls_embedding to zeros; use random values so the CLS-prepend and
    # positional-add paths are actually exercised/verified.
    cls_embedding = jax.random.normal(kc, (D_MODEL,), dtype=jnp.float32) * 0.02
    pe = jax.random.normal(kp, (MAX_LEN + 1, D_MODEL), dtype=jnp.float32) * 0.02

    out = jax.block_until_ready(embed_sequence(x, weight, bias, cls_embedding, pe))

    # Pure-JAX reference matching the PyTorch forward, using the same bf16 rounding of the
    # matmul operands that the kernel applies (f32 accumulation in both cases).
    x_bf = x.astype(jnp.bfloat16).astype(jnp.float32)
    w_bf = weight.astype(jnp.bfloat16).astype(jnp.float32)
    emb_ref = jnp.einsum("bnp,dp->bnd", x_bf, w_bf,
                         preferred_element_type=jnp.float32) + bias      # Linear
    cls_ref = jnp.broadcast_to(cls_embedding, (B, 1, D_MODEL))
    ref = jnp.concatenate([cls_ref, emb_ref], axis=1) + pe[: N_PATCH + 1]

    assert out.shape == (B, N_PATCH + 1, D_MODEL)
    assert jnp.allclose(out, ref, atol=1e-4, rtol=1e-4), "mismatch vs reference"
    print("KERNEL_OK")
</pallas_src>

<mosaic_0001>
module attributes {stable_mosaic.version = 11 : i64} {
  func.func @embed_sequence_kernel(%arg0: i32, %arg1: memref<2x8x128xf32, #tpu.memory_space<vmem>>, %arg2: memref<128x128xbf16, #tpu.memory_space<vmem>>, %arg3: memref<1x128xf32, #tpu.memory_space<vmem>>, %arg4: memref<8x128xf32, #tpu.memory_space<vmem>>, %arg5: memref<2x9x128xf32, #tpu.memory_space<vmem>>) attributes {dimension_semantics = [#tpu.dimension_semantics<parallel>], iteration_bounds = array<i64: 1>, scalar_prefetch = 0 : i64, scratch_operands = 0 : i64, tpu.core_type = #tpu.core_type<tc>, window_params = [{transform_indices = @transform_0, window_bounds = array<i64: 2, 8, 128>}, {pipeline_mode = #tpu.pipeline_mode<synchronous>, transform_indices = @transform_1, window_bounds = array<i64: 128, 128>}, {pipeline_mode = #tpu.pipeline_mode<synchronous>, transform_indices = @transform_2, window_bounds = array<i64: 1, 128>}, {pipeline_mode = #tpu.pipeline_mode<synchronous>, transform_indices = @transform_3, window_bounds = array<i64: 8, 128>}, {transform_indices = @transform_4, window_bounds = array<i64: 2, 9, 128>}]} {
    %c0 = arith.constant 0 : index
    %c0_0 = arith.constant 0 : index
    %c0_1 = arith.constant 0 : index
    %0 = vector.load %arg1[%c0, %c0_0, %c0_1] : memref<2x8x128xf32, #tpu.memory_space<vmem>>, vector<2x8x128xf32>
    %1 = vector.shape_cast %0 : vector<2x8x128xf32> to vector<16x128xf32>
    %2 = arith.truncf %1 : vector<16x128xf32> to vector<16x128xbf16>
    %c0_2 = arith.constant 0 : index
    %c0_3 = arith.constant 0 : index
    %3 = vector.load %arg2[%c0_2, %c0_3] : memref<128x128xbf16, #tpu.memory_space<vmem>>, vector<128x128xbf16>
    %cst = arith.constant dense<0.000000e+00> : vector<16x128xf32>
    %4 = tpu.matmul %2, %3, %cst {dimension_numbers = #tpu.dot_dimension_numbers<[1], [1], [0], [0], [0, 0, 1, 0], [], []>} : vector<16x128xbf16>, vector<128x128xbf16>, vector<16x128xf32> -> vector<16x128xf32>
    %5 = vector.shape_cast %4 : vector<16x128xf32> to vector<2x8x128xf32>
    %c0_4 = arith.constant 0 : index
    %c0_5 = arith.constant 0 : index
    %6 = vector.load %arg4[%c0_4, %c0_5] : memref<8x128xf32, #tpu.memory_space<vmem>>, vector<8x128xf32>
    %7 = vector.shape_cast %6 : vector<8x128xf32> to vector<1x8x128xf32>
    %8 = vector.broadcast %7 : vector<1x8x128xf32> to vector<2x8x128xf32>
    %9 = arith.addf %5, %8 : vector<2x8x128xf32>
    %c0_6 = arith.constant 0 : index
    %c0_7 = arith.constant 0 : index
    %10 = vector.load %arg3[%c0_6, %c0_7] : memref<1x128xf32, #tpu.memory_space<vmem>>, vector<1x128xf32>
    %11 = vector.shape_cast %10 : vector<1x128xf32> to vector<1x1x128xf32>
    %12 = vector.broadcast %11 : vector<1x1x128xf32> to vector<2x1x128xf32>
    %c0_8 = arith.constant 0 : index
    %c0_9 = arith.constant 0 : index
    %c0_10 = arith.constant 0 : index
    %13 = vector.load %arg5[%c0_8, %c0_9, %c0_10] : memref<2x9x128xf32, #tpu.memory_space<vmem>>, vector<2x1x128xf32>
    tpu.vector_store %arg5[%c0_8, %c0_9, %c0_10], %12 {strides = array<i32>} : memref<2x9x128xf32, #tpu.memory_space<vmem>>, vector<2x1x128xf32>,
    %c0_11 = arith.constant 0 : index
    %c1 = arith.constant 1 : index
    %c0_12 = arith.constant 0 : index
    %14 = vector.load %arg5[%c0_11, %c1, %c0_12] : memref<2x9x128xf32, #tpu.memory_space<vmem>>, vector<2x8x128xf32>
    tpu.vector_store %arg5[%c0_11, %c1, %c0_12], %9 {strides = array<i32>} : memref<2x9x128xf32, #tpu.memory_space<vmem>>, vector<2x8x128xf32>,
    return
  }
  func.func @transform_0(%arg0: i32) -> (i32, i32, i32) {
    %c0_i32 = arith.constant 0 : i32
    %c0_i32_0 = arith.constant 0 : i32
    %c0_i32_1 = arith.constant 0 : i32
    return %arg0, %c0_i32, %c0_i32_0 : i32, i32, i32
  }
  func.func @transform_1(%arg0: i32) -> (i32, i32) {
    %c0_i32 = arith.constant 0 : i32
    %c0_i32_0 = arith.constant 0 : i32
    %c0_i32_1 = arith.constant 0 : i32
    return %c0_i32, %c0_i32_0 : i32, i32
  }
  func.func @transform_2(%arg0: i32) -> (i32, i32) {
    %c0_i32 = arith.constant 0 : i32
    %c0_i32_0 = arith.constant 0 : i32
    %c0_i32_1 = arith.constant 0 : i32
    return %c0_i32, %c0_i32_0 : i32, i32
  }
  func.func @transform_3(%arg0: i32) -> (i32, i32) {
    %c0_i32 = arith.constant 0 : i32
    %c0_i32_0 = arith.constant 0 : i32
    %c0_i32_1 = arith.constant 0 : i32
    return %c0_i32, %c0_i32_0 : i32, i32
  }
  func.func @transform_4(%arg0: i32) -> (i32, i32, i32) {
    %c0_i32 = arith.constant 0 : i32
    %c0_i32_0 = arith.constant 0 : i32
    %c0_i32_1 = arith.constant 0 : i32
    return %arg0, %c0_i32, %c0_i32_0 : i32, i32, i32
  }
}

</mosaic_0001>

<llo_original>
// kernel: tpu_custom_call.1
$region0: #{tpu_custom_call.1}
  #allocation0 [shape = 'u32[]', space=smem, size = 0x4, offset = 0x4, fixed_abs, tag = 'smem constant byte address 0x4 - core index']
  #allocation1 [shape = 'u32[144,128]{1,0:T(1,128)}', space=vmem, size = 0x12000, scoped, tag = 'internal scratch']
  %s0 = inlined_call_operand.hbm [shape: f32[2,8,128], index: 0, kind: input, shape index: {}]
  %s1 = inlined_call_operand.hbm [shape: bf16[128,128], index: 1, kind: input, shape index: {}]
  %s2 = inlined_call_operand.vmem [shape: f32[1,128], index: 2, kind: input, shape index: {}]
  %s3 = inlined_call_operand.vmem [shape: f32[8,128], index: 3, kind: input, shape index: {}]
  %s4 = inlined_call_operand.vmem [shape: f32[2,9,128], index: 4, kind: output, shape index: {}]
  %s5 = sld [smem:[#allocation0]]
  $region34: #{tpu_custom_call.1} parent=0
    _
  %s7 = ssub.s32 1, %s5
  %s8 = scalar_select 0, %s7, %s5
  $region1: #{tpu_custom_call.1} parent=0
    #allocation2 [shape = 'u8[8192]{0}', space=vmem, size = 0x2000, scoped, tag = 'input window, operand 0, single buffered']
    #allocation3 [shape = 's32[1]{0}', space=sflag, size = 0x4, scoped, tag = 'scoped memory for tpu_custom_call.1']
    #allocation4 [shape = 'u8[32768]{0}', space=vmem, size = 0x8000, scoped, tag = 'input window, operand 1, single buffered']
    #allocation5 [shape = 's32[1]{0}', space=sflag, size = 0x4, scoped, tag = 'scoped memory for tpu_custom_call.1']
    %9 = vsyncpa [#allocation3], 0
    %10 = vsyncpa [#allocation5], 0
    // Predicated region
    $region2: #{tpu_custom_call.1} parent=1 // pred_check
      _
    $region3: #{tpu_custom_call.1} parent=1 // pred_check_branch
      %12 = sbr.rel (0) target = $region5
    $region4: #{tpu_custom_call.1} parent=1 // pred_region
      %s14 = ssub.s32 256, 256
      %15 = vsyncadd [#allocation3], %s14
      %s16 = sshll.u32 [#allocation2], 4
      %s17 = int_to_ptr.vmem [resolvable:$true] %s16
      %22 = dma.hbm_to_vmem [thread:$0]  %s0, 256, %s17, [#allocation3], 128, 128, 8
    $region5: #{tpu_custom_call.1} parent=1 // pred_fallthru
      _
    // Predicated region
    $region6: #{tpu_custom_call.1} parent=1 // pred_check
      _
    $region7: #{tpu_custom_call.1} parent=1 // pred_check_branch
      %24 = sbr.rel (0) target = $region9
    $region8: #{tpu_custom_call.1} parent=1 // pred_region
      %s26 = ssub.s32 1024, 1024
      %27 = vsyncadd [#allocation5], %s26
      %s28 = sshll.u32 [#allocation4], 4
      %s29 = int_to_ptr.vmem [resolvable:$true] %s28
      %34 = dma.hbm_to_vmem [thread:$0]  %s1, 1024, %s29, [#allocation5], 64, 64, 4
    $region9: #{tpu_custom_call.1} parent=1 // pred_fallthru
      _
    // Predicated region
    $region10: #{tpu_custom_call.1} parent=1 // pred_check
      _
    $region11: #{tpu_custom_call.1} parent=1 // pred_check_branch
      %36 = sbr.rel (0) target = $region13
    $region12: #{tpu_custom_call.1} parent=1 // pred_region
      _
    $region13: #{tpu_custom_call.1} parent=1 // pred_fallthru
      _
    // Predicated region
    $region14: #{tpu_custom_call.1} parent=1 // pred_check
      _
    $region15: #{tpu_custom_call.1} parent=1 // pred_check_branch
      %38 = sbr.rel (0) target = $region17
    $region16: #{tpu_custom_call.1} parent=1 // pred_region
      _
    $region17: #{tpu_custom_call.1} parent=1 // pred_fallthru
      _
    // Predicated region
    $region18: #{tpu_custom_call.1} parent=1 // pred_check
      _
    $region19: #{tpu_custom_call.1} parent=1 // pred_check_branch
      %40 = sbr.rel (0) target = $region21
    $region20: #{tpu_custom_call.1} parent=1 // pred_region
      %41 = dma.done [#allocation3], 256
    $region21: #{tpu_custom_call.1} parent=1 // pred_fallthru
      _
    // Predicated region
    $region22: #{tpu_custom_call.1} parent=1 // pred_check
      _
    $region23: #{tpu_custom_call.1} parent=1 // pred_check_branch
      %43 = sbr.rel (0) target = $region25
    $region24: #{tpu_custom_call.1} parent=1 // pred_region
      %44 = dma.done [#allocation5], 1024
    $region25: #{tpu_custom_call.1} parent=1 // pred_fallthru
      _
    %v46 = vld [vmem:[#allocation2] sm:$0xff]
    %v47 = vld [vmem:[#allocation2 + $0x8] sm:$0xff]
    %v48 = vpack.c.bf16 %v47, %v46
    %v49 = vld [vmem:[#allocation4] sm:$0xf]
    %v50 = vld [vmem:[#allocation4 + $0x4] sm:$0xf]
    %v51 = vld [vmem:[#allocation4 + $0x8] sm:$0xf]
    %v52 = vld [vmem:[#allocation4 + $0xc] sm:$0xf]
    %v53 = vld [vmem:[#allocation4 + $0x10] sm:$0xf]
    %v54 = vld [vmem:[#allocation4 + $0x14] sm:$0xf]
    %v55 = vld [vmem:[#allocation4 + $0x18] sm:$0xf]
    %v56 = vld [vmem:[#allocation4 + $0x1c] sm:$0xf]
    %v57 = vld [vmem:[#allocation4 + $0x20] sm:$0xf]
    %v58 = vld [vmem:[#allocation4 + $0x24] sm:$0xf]
    %v59 = vld [vmem:[#allocation4 + $0x28] sm:$0xf]
    %v60 = vld [vmem:[#allocation4 + $0x2c] sm:$0xf]
    %v61 = vld [vmem:[#allocation4 + $0x30] sm:$0xf]
    %v62 = vld [vmem:[#allocation4 + $0x34] sm:$0xf]
    %v63 = vld [vmem:[#allocation4 + $0x38] sm:$0xf]
    %v64 = vld [vmem:[#allocation4 + $0x3c] sm:$0xf]
    %v81 = vunpack.c.l.b16 %v49
    %v82 = vunpack.c.l.b16 %v50
    %v83 = vunpack.c.l.b16 %v51
    %v84 = vunpack.c.l.b16 %v52
    %v85 = vunpack.c.l.b16 %v53
    %v86 = vunpack.c.l.b16 %v54
    %v87 = vunpack.c.l.b16 %v55
    %v88 = vunpack.c.l.b16 %v56
    %v89 = vunpack.c.l.b16 %v57
    %v90 = vunpack.c.l.b16 %v58
    %v91 = vunpack.c.l.b16 %v59
    %v92 = vunpack.c.l.b16 %v60
    %v93 = vunpack.c.l.b16 %v61
    %v94 = vunpack.c.l.b16 %v62
    %v95 = vunpack.c.l.b16 %v63
    %v96 = vunpack.c.l.b16 %v64
    %v97 = vpack.c.b16 %v82, %v81
    %v98 = vpack.c.b16 %v84, %v83
    %v99 = vpack.c.b16 %v86, %v85
    %v100 = vpack.c.b16 %v88, %v87
    %v101 = vpack.c.b16 %v90, %v89
    %v102 = vpack.c.b16 %v92, %v91
    %v103 = vpack.c.b16 %v94, %v93
    %v104 = vpack.c.b16 %v96, %v95
    %113 = vmatprep.subr.bf16.mxu0 0
    %114 = vmatpush1.bf16.xpose.msra.mxu0 %v97
    %115 = vmatprep.subr.bf16.mxu0 0
    %116 = vmatpush1.bf16.xpose.msra.mxu0 %v98
    %117 = vmatprep.subr.bf16.mxu0 0
    %118 = vmatpush1.bf16.xpose.msra.mxu0 %v99
    %119 = vmatprep.subr.bf16.mxu0 0
    %120 = vmatpush1.bf16.xpose.msra.mxu0 %v100
    %121 = vmatprep.subr.bf16.mxu0 0
    %122 = vmatpush1.bf16.xpose.msra.mxu0 %v101
    %123 = vmatprep.subr.bf16.mxu0 0
    %124 = vmatpush1.bf16.xpose.msra.mxu0 %v102
    %125 = vmatprep.subr.bf16.mxu0 0
    %126 = vmatpush1.bf16.xpose.msra.mxu0 %v103
    %127 = vmatprep.subr.bf16.mxu0 0
    %128 = vmatpush1.bf16.xpose.msra.mxu0 %v104
    %129 = vmatprep.subr.bf16.mxu0 0
    %130 = vmatpush1.bf16.xpose.msra.mxu0 0
    %131 = vmatprep.subr.bf16.mxu0 0
    %132 = vmatpush1.bf16.xpose.msra.mxu0 0
    %133 = vmatprep.subr.bf16.mxu0 0
    %134 = vmatpush1.bf16.xpose.msra.mxu0 0
    %135 = vmatprep.subr.bf16.mxu0 0
    %136 = vmatpush1.bf16.xpose.msra.mxu0 0
    %137 = vmatprep.subr.bf16.mxu0 0
    %138 = vmatpush1.bf16.xpose.msra.mxu0 0
    %139 = vmatprep.subr.bf16.mxu0 0
    %140 = vmatpush1.bf16.xpose.msra.mxu0 0
    %141 = vmatprep.subr.bf16.mxu0 0
    %142 = vmatpush1.bf16.xpose.msra.mxu0 0
    %143 = vmatprep.subr.bf16.mxu0 0
    %144 = vmatpush1.bf16.xpose.msra.mxu0 0
    %145 = vmatprep.mubr.bf16.mxu0 0
    %146 = vmatmul.mubr.bf16.gmra.mrb[0].mxu0 %v48
    %v147 = vpop.f32.mrb[0].mxu0
    %v148 = vadd.f32 0.0, %v147
    %v149 = vpop.f32.mrb[0].mxu0
    %v150 = vpop.f32.mrb[0].mxu0
    %v151 = vadd.f32 0.0, %v150
    %v152 = vpop.f32.mrb[0].mxu0
    %153 = vdwg.mxu0
    %v154 = vld [vmem:[%s3] sm:$0xff]
    %v155 = vadd.f32 %v148, %v154
    %v156 = vadd.f32 %v151, %v154
    %v157 = vld [vmem:[%s2] sm:$0x1]
    %158 = vst [vmem:[%s4] sm:$0x1] %v157
    %159 = vst [vmem:[%s4 + $0x10] sm:$0x1] %v157
    %160 = vst [vmem:[%s4 + $0x1] sm:$0xff] %v155
    %161 = vst [vmem:[%s4 + $0x11] sm:$0xff] %v156
    // Predicated region
    $region26: #{tpu_custom_call.1} parent=1 // pred_check
      _
    $region27: #{tpu_custom_call.1} parent=1 // pred_check_branch
      %163 = sbr.rel (0) target = $region29
    $region28: #{tpu_custom_call.1} parent=1 // pred_region
      _
    $region29: #{tpu_custom_call.1} parent=1 // pred_fallthru
      _
    // Predicated region
    $region30: #{tpu_custom_call.1} parent=1 // pred_check
      _
    $region31: #{tpu_custom_call.1} parent=1 // pred_check_branch
      %165 = sbr.rel (0) target = $region33
    $region32: #{tpu_custom_call.1} parent=1 // pred_region
      _
    $region33: #{tpu_custom_call.1} parent=1 // pred_fallthru
      _
    %166 = vsyncpa [#allocation3], 1
    %167 = vsyncpa [#allocation5], 1

</llo_original>
